<compile_context>
chip_gen: v5e
topology: v5e:2x2
jax: 0.10.0
libtpu: 0.0.40
codegen_flags: <defaults>
</compile_context>

<pallas_src>
import functools

import jax
import jax.numpy as jnp
from jax.experimental import pallas as pl
from jax.experimental.pallas import tpu as pltpu


def _round_up(x: int, m: int) -> int:
    return (x + m - 1) // m * m


def _sublane_multiple(dtype) -> int:
    # f32 -> 8, bf16 -> 16, int8/fp8 -> 32 (sub-32-bit dtypes pack along sublanes).
    return max(8, 32 // jnp.dtype(dtype).itemsize)


def pack_params(params, param_dtype=jnp.float32):
    """Pack (w1, b1, w2, b2) into one lane-padded f32 buffer.  Call ONCE at init."""
    w1, b1, w2, b2 = params
    n_in, n_2 = w1.shape
    n_2_pad = _round_up(n_2, 128)
    r_b1 = _round_up(n_in, 8)
    rows = _round_up(r_b1 + 3, 8)

    p = jnp.zeros((rows, n_2_pad), param_dtype)
    p = p.at[:n_in, :n_2].set(w1.astype(param_dtype))
    p = p.at[r_b1, :n_2].set(b1.astype(param_dtype))
    p = p.at[r_b1 + 1, :n_2].set(w2[:, 0].astype(param_dtype))
    p = p.at[r_b1 + 2, :].set(
        jnp.broadcast_to(b2.reshape(()).astype(param_dtype), (n_2_pad,)))
    return p


def _mlp_kernel(x_ref, p_ref, o_ref, *, n_in: int, r_b1: int):
    """Fused fc1 + ReLU + fc2(=1) for one batch tile; lane-dense (1,1,tb) store."""
    x = x_ref[...]                                   # (tb, n_in), native dtype

    # fc1 on the MXU, f32 accumulation.
    w1 = p_ref[:n_in, :]                             # (n_in, n_2_pad) f32
    h = jnp.dot(x, w1, preferred_element_type=jnp.float32)   # (tb, n_2_pad)

    # bias + ReLU on the VPU (padded lanes stay exactly zero).
    b1 = p_ref[r_b1:r_b1 + 1, :]                     # (1, n_2_pad)
    h = jnp.maximum(h + b1, 0.0)

    # fc2 head (n_out == 1): w2 . h^T on the MXU gives a lane-major (1, tb) row
    # directly -> lane-dense store, no XLU cross-lane reduce, no masked column.
    w2 = p_ref[r_b1 + 1:r_b1 + 2, :]                 # (1, n_2_pad)
    out_row = jax.lax.dot_general(
        w2, h, (((1,), (1,)), ((), ())),
        preferred_element_type=jnp.float32)          # (1, tb)

    b2 = p_ref[r_b1 + 2:r_b1 + 3, 0:1]               # (1, 1) -- b2 broadcast row
    o_ref[...] = (out_row + b2).reshape(o_ref.shape).astype(o_ref.dtype)


def dummy_model_forward(numeric, spatial, packed, *, n_in: int, block_b: int = 1024):
    """Forward pass.  `packed` comes from pack_params (done once at init).

    `spatial` is accepted but unused, matching DummyModel.forward's signature.
    """
    del spatial  # unused by DummyModel.forward

    B = numeric.shape[0]
    assert numeric.shape[1] == n_in
    out_dtype = numeric.dtype
    r_b1 = _round_up(n_in, 8)

    # --- Batch tiling (parallel grid axis). ---
    sub = _sublane_multiple(numeric.dtype)
    b_pad = _round_up(B, sub)
    tb = min(b_pad, _round_up(block_b, sub))
    b_pad = _round_up(b_pad, tb)
    # Give v7x's two TensorCores >= 2 parallel grid steps when it costs no padding.
    if b_pad // tb == 1 and b_pad // 2 >= sub and (b_pad // 2) % sub == 0:
        tb = b_pad // 2
    num_blocks = b_pad // tb

    x = numeric
    if b_pad != B:
        # TODO(synk): for large ragged B, replace this pad with an in-kernel
        # masked tail tile to avoid the extra HBM pass over x.
        x = jnp.pad(x, ((0, b_pad - B), (0, 0)))

    kernel = functools.partial(_mlp_kernel, n_in=n_in, r_b1=r_b1)

    out = pl.pallas_call(
        kernel,
        out_shape=jax.ShapeDtypeStruct((num_blocks, 1, tb), out_dtype),
        grid=(num_blocks,),
        in_specs=[
            pl.BlockSpec((tb, n_in), lambda i: (i, 0)),        # activations (streamed)
            pl.BlockSpec(packed.shape, lambda i: (0, 0)),      # packed params (resident)
        ],
        out_specs=pl.BlockSpec((1, 1, tb), lambda i: (i, 0, 0)),  # lane-dense rows
        compiler_params=pltpu.CompilerParams(
            dimension_semantics=("parallel",),
        ),
    )(x, packed)

    # (num_blocks, 1, tb) -> (b_pad, 1); padded rows (garbage) are sliced off.
    return out.reshape(b_pad, 1)[:B]


def reference_forward(numeric, params):
    """Pure-JAX reference of DummyModel.forward."""
    w1, b1, w2, b2 = params
    h = jnp.maximum(numeric @ w1 + b1, 0.0)
    return h @ w2 + b2


if __name__ == "__main__":
    B, n_in, n_2 = 8, 32, 64

    key = jax.random.PRNGKey(0)
    k_num, k_sp, k1, k2, k3, k4 = jax.random.split(key, 6)
    numeric = jax.random.normal(k_num, (B, n_in), jnp.float32)
    spatial = jax.random.normal(k_sp, (B, 4, 16, 16), jnp.float32)  # unused by forward

    bound1 = 1.0 / (n_in ** 0.5)
    w1 = jax.random.uniform(k1, (n_in, n_2), jnp.float32, -bound1, bound1)
    b1 = jax.random.uniform(k2, (n_2,), jnp.float32, -bound1, bound1)
    bound2 = 1.0 / (n_2 ** 0.5)
    w2 = jax.random.uniform(k3, (n_2, 1), jnp.float32, -bound2, bound2)
    b2 = jax.random.uniform(k4, (1,), jnp.float32, -bound2, bound2)
    params = (w1, b1, w2, b2)

    # Pack once at init (hoisted out of the per-call forward path).
    packed = jax.block_until_ready(pack_params(params))

    fwd = jax.jit(functools.partial(dummy_model_forward, n_in=n_in))
    out = jax.block_until_ready(fwd(numeric, spatial, packed))

    ref = reference_forward(numeric, params)
    assert out.shape == (B, 1), out.shape
    assert jnp.allclose(out, ref, atol=1e-5, rtol=1e-5), (
        float(jnp.max(jnp.abs(out - ref)))
    )

    print("KERNEL_OK")
</pallas_src>

<mosaic_0001>
module attributes {stable_mosaic.version = 11 : i64} {
  func.func @_mlp_kernel(%arg0: i32, %arg1: memref<8x32xf32, #tpu.memory_space<vmem>>, %arg2: memref<40x128xf32, #tpu.memory_space<vmem>>, %arg3: memref<1x1x8xf32, #tpu.memory_space<vmem>>) attributes {dimension_semantics = [#tpu.dimension_semantics<parallel>], iteration_bounds = array<i64: 1>, scalar_prefetch = 0 : i64, scratch_operands = 0 : i64, tpu.core_type = #tpu.core_type<tc>, window_params = [{transform_indices = @transform_0, window_bounds = array<i64: 8, 32>}, {pipeline_mode = #tpu.pipeline_mode<synchronous>, transform_indices = @transform_1, window_bounds = array<i64: 40, 128>}, {transform_indices = @transform_2, window_bounds = array<i64: 1, 1, 8>}]} {
    %c0 = arith.constant 0 : index
    %c0_0 = arith.constant 0 : index
    %0 = vector.load %arg1[%c0, %c0_0] : memref<8x32xf32, #tpu.memory_space<vmem>>, vector<8x32xf32>
    %c0_1 = arith.constant 0 : index
    %c0_2 = arith.constant 0 : index
    %1 = vector.load %arg2[%c0_1, %c0_2] : memref<40x128xf32, #tpu.memory_space<vmem>>, vector<32x128xf32>
    %cst = arith.constant dense<0.000000e+00> : vector<8x128xf32>
    %2 = tpu.matmul %0, %1, %cst {dimension_numbers = #tpu.dot_dimension_numbers<[1], [0], [0], [1], [0, 0, 1, 1], [], []>} : vector<8x32xf32>, vector<32x128xf32>, vector<8x128xf32> -> vector<8x128xf32>
    %c32 = arith.constant 32 : index
    %c0_3 = arith.constant 0 : index
    %3 = vector.load %arg2[%c32, %c0_3] : memref<40x128xf32, #tpu.memory_space<vmem>>, vector<1x128xf32>
    %4 = vector.broadcast %3 : vector<1x128xf32> to vector<8x128xf32>
    %5 = arith.addf %2, %4 : vector<8x128xf32>
    %cst_4 = arith.constant 0.000000e+00 : f32
    %6 = vector.broadcast %cst_4 : f32 to vector<8x128xf32>
    %7 = arith.maximumf %5, %6 : vector<8x128xf32>
    %c33 = arith.constant 33 : index
    %c0_5 = arith.constant 0 : index
    %8 = vector.load %arg2[%c33, %c0_5] : memref<40x128xf32, #tpu.memory_space<vmem>>, vector<1x128xf32>
    %cst_6 = arith.constant dense<0.000000e+00> : vector<1x8xf32>
    %9 = tpu.matmul %8, %7, %cst_6 {dimension_numbers = #tpu.dot_dimension_numbers<[1], [1], [0], [0], [0, 0, 1, 0], [], []>} : vector<1x128xf32>, vector<8x128xf32>, vector<1x8xf32> -> vector<1x8xf32>
    %c34 = arith.constant 34 : index
    %c0_7 = arith.constant 0 : index
    %10 = vector.load %arg2[%c34, %c0_7] : memref<40x128xf32, #tpu.memory_space<vmem>>, vector<1x1xf32>
    %11 = vector.broadcast %10 : vector<1x1xf32> to vector<1x8xf32>
    %12 = arith.addf %9, %11 : vector<1x8xf32>
    %13 = vector.shape_cast %12 : vector<1x8xf32> to vector<1x1x8xf32>
    %c0_8 = arith.constant 0 : index
    %c0_9 = arith.constant 0 : index
    %c0_10 = arith.constant 0 : index
    %14 = vector.load %arg3[%c0_8, %c0_9, %c0_10] : memref<1x1x8xf32, #tpu.memory_space<vmem>>, vector<1x1x8xf32>
    tpu.vector_store %arg3[%c0_8, %c0_9, %c0_10], %13 {strides = array<i32>} : memref<1x1x8xf32, #tpu.memory_space<vmem>>, vector<1x1x8xf32>,
    return
  }
  func.func @transform_0(%arg0: i32) -> (i32, i32) {
    %c0_i32 = arith.constant 0 : i32
    %c0_i32_0 = arith.constant 0 : i32
    return %arg0, %c0_i32 : i32, i32
  }
  func.func @transform_1(%arg0: i32) -> (i32, i32) {
    %c0_i32 = arith.constant 0 : i32
    %c0_i32_0 = arith.constant 0 : i32
    %c0_i32_1 = arith.constant 0 : i32
    return %c0_i32, %c0_i32_0 : i32, i32
  }
  func.func @transform_2(%arg0: i32) -> (i32, i32, i32) {
    %c0_i32 = arith.constant 0 : i32
    %c0_i32_0 = arith.constant 0 : i32
    %c0_i32_1 = arith.constant 0 : i32
    return %arg0, %c0_i32, %c0_i32_0 : i32, i32, i32
  }
}

</mosaic_0001>

<llo_original>
// kernel: dummy_model_forward.1
$region0: #{dummy_model_forward.1}
  #allocation0 [shape = 'u32[]', space=smem, size = 0x4, offset = 0x4, fixed_abs, tag = 'smem constant byte address 0x4 - core index']
  #allocation1 [shape = 'u32[72,128]{1,0:T(1,128)}', space=vmem, size = 0x9000, scoped, tag = 'internal scratch']
  %s0 = inlined_call_operand.hbm [shape: f32[8,32], index: 0, kind: input, shape index: {}]
  %s1 = inlined_call_operand.hbm [shape: f32[40,128], index: 1, kind: input, shape index: {}]
  %s2 = inlined_call_operand.hbm [shape: f32[1,1,8], index: 2, kind: output, shape index: {}]
  %s3 = sld [smem:[#allocation0]]
  $region26: #{dummy_model_forward.1} parent=0
    _
  %s5 = ssub.s32 1, %s3
  %s6 = scalar_select 0, %s5, %s3
  $region1: #{dummy_model_forward.1} parent=0
    #allocation2 [shape = 'u8[4096]{0}', space=vmem, size = 0x1000, scoped, tag = 'input window, operand 0, single buffered']
    #allocation3 [shape = 's32[1]{0}', space=sflag, size = 0x4, scoped, tag = 'scoped memory for dummy_model_forward.1']
    #allocation4 [shape = 's32[1]{0}', space=sflag, size = 0x4, scoped, tag = 'scoped memory for dummy_model_forward.1']
    #allocation5 [shape = 'u8[20480]{0}', space=vmem, size = 0x5000, scoped, tag = 'input window, operand 1, single buffered']
    #allocation6 [shape = 's32[1]{0}', space=sflag, size = 0x4, scoped, tag = 'scoped memory for dummy_model_forward.1']
    #allocation7 [shape = 'u8[512]{0}', space=vmem, size = 0x400, scoped, tag = 'output window, operand 0, single buffered']
    %7 = vsyncpa [#allocation3], 0
    %8 = vsyncpa [#allocation6], 0
    %9 = vsyncpa [#allocation4], 0
    // Predicated region
    $region2: #{dummy_model_forward.1} parent=1 // pred_check
      _
    $region3: #{dummy_model_forward.1} parent=1 // pred_check_branch
      %11 = sbr.rel (0) target = $region5
    $region4: #{dummy_model_forward.1} parent=1 // pred_region
      %13 = vsyncadd [#allocation3], 0
      %s15 = sshll.u32 %s0, 4
      %s16 = int_to_ptr.hbm [resolvable:$true] %s15
      %s17 = sshll.u32 [#allocation2], 4
      %s18 = int_to_ptr.vmem [resolvable:$true] %s17
      %20 = dma.hbm_to_vmem [thread:$0]  %s16, 128, %s18, [#allocation3]
    $region5: #{dummy_model_forward.1} parent=1 // pred_fallthru
      _
    // Predicated region
    $region6: #{dummy_model_forward.1} parent=1 // pred_check
      _
    $region7: #{dummy_model_forward.1} parent=1 // pred_check_branch
      %22 = sbr.rel (0) target = $region9
    $region8: #{dummy_model_forward.1} parent=1 // pred_region
      %24 = vsyncadd [#allocation6], 0
      %s25 = sshll.u32 %s1, 4
      %s26 = int_to_ptr.hbm [resolvable:$true] %s25
      %s27 = sshll.u32 [#allocation5], 4
      %s28 = int_to_ptr.vmem [resolvable:$true] %s27
      %33 = dma.hbm_to_vmem [thread:$0]  %s26, 640, %s28, [#allocation6], 128, 128, 8
    $region9: #{dummy_model_forward.1} parent=1 // pred_fallthru
      _
    // Predicated region
    $region10: #{dummy_model_forward.1} parent=1 // pred_check
      _
    $region11: #{dummy_model_forward.1} parent=1 // pred_check_branch
      %35 = sbr.rel (0) target = $region13
    $region12: #{dummy_model_forward.1} parent=1 // pred_region
      %37 = dma.done [#allocation3], 128
    $region13: #{dummy_model_forward.1} parent=1 // pred_fallthru
      _
    // Predicated region
    $region14: #{dummy_model_forward.1} parent=1 // pred_check
      _
    $region15: #{dummy_model_forward.1} parent=1 // pred_check_branch
      %39 = sbr.rel (0) target = $region17
    $region16: #{dummy_model_forward.1} parent=1 // pred_region
      %41 = dma.done [#allocation6], 640
    $region17: #{dummy_model_forward.1} parent=1 // pred_fallthru
      _
    %v42 = vld [vmem:[#allocation2] sm:$0xff]
    %v43 = vld [vmem:[#allocation5] sm:$0xff]
    %v44 = vld [vmem:[#allocation5 + $0x8] sm:$0xff]
    %v45 = vld [vmem:[#allocation5 + $0x10] sm:$0xff]
    %v46 = vld [vmem:[#allocation5 + $0x18] sm:$0xff]
    %v47 = vld [vmem:[#allocation5 + $0x20] sm:$0x1]
    %v48 = vperm.slane %v47, 0
    %vm49 = vcmask 261120
    %v51 = vsel %vm49, %v42, 0
    %53 = vmatpush.msra.mxu0 0.0
    %54 = vmatpush.msra.mxu0 0.0
    %55 = vmatpush.msra.mxu0 0.0
    %56 = vmatpush.msra.mxu0 0.0
    %57 = vmatpush.msra.mxu0 0.0
    %58 = vmatpush.msra.mxu0 0.0
    %59 = vmatpush.msra.mxu0 0.0
    %60 = vmatpush.msra.mxu0 0.0
    %61 = vmatpush.msra.mxu0 0.0
    %62 = vmatpush.msra.mxu0 0.0
    %63 = vmatpush.msra.mxu0 0.0
    %64 = vmatpush.msra.mxu0 0.0
    %65 = vmatpush.msra.mxu0 %v46
    %66 = vmatpush.msra.mxu0 %v45
    %67 = vmatpush.msra.mxu0 %v44
    %68 = vmatpush.msra.mxu0 %v43
    %69 = vmatmul.f32.gmra.mxu0 %v51
    %v70 = vpop.f32.mrf.mxu0
    %v71 = vadd.f32 %v48, %v70
    %72 = vdwg.mxu0
    %v73 = vmax.f32 %v71, 0.0
    %v74 = vld [vmem:[#allocation5 + $0x21] sm:$0x1]
    %v75 = vld [vmem:[#allocation5 + $0x22] sm:$0x1]
    %77 = vset.pattern.permute.xlu0 0
    %78 = vperm.xlu0 %77, %v75
    %v79 = vpop.permute.xlu0 %78
    %81 = vmatpush.xpose.msra.mxu0 0.0
    %82 = vmatpush.xpose.msra.mxu0 0.0
    %83 = vmatpush.xpose.msra.mxu0 0.0
    %84 = vmatpush.xpose.msra.mxu0 0.0
    %85 = vmatpush.xpose.msra.mxu0 0.0
    %86 = vmatpush.xpose.msra.mxu0 0.0
    %87 = vmatpush.xpose.msra.mxu0 0.0
    %88 = vmatpush.xpose.msra.mxu0 0.0
    %89 = vmatpush.xpose.msra.mxu0 0.0
    %90 = vmatpush.xpose.msra.mxu0 0.0
    %91 = vmatpush.xpose.msra.mxu0 0.0
    %92 = vmatpush.xpose.msra.mxu0 0.0
    %93 = vmatpush.xpose.msra.mxu0 0.0
    %94 = vmatpush.xpose.msra.mxu0 0.0
    %95 = vmatpush.xpose.msra.mxu0 0.0
    %96 = vmatpush.xpose.msra.mxu0 %v73
    %97 = vmatmul.f32.gmra.mxu0 %v74
    %v98 = vpop.f32.mrf.mxu0
    %v99 = vadd.f32 %v79, %v98
    %100 = vdwg.mxu0
    %vm101 = vcmask 57344
    %102 = vst.msk [vmem:[#allocation7] sm:$0x1] %vm101, %v99
    // Predicated region
    $region18: #{dummy_model_forward.1} parent=1 // pred_check
      _
    $region19: #{dummy_model_forward.1} parent=1 // pred_check_branch
      %104 = sbr.rel (0) target = $region21
    $region20: #{dummy_model_forward.1} parent=1 // pred_region
      %106 = vsyncadd [#allocation4], 0
      %s108 = sshll.u32 [#allocation7], 4
      %s109 = int_to_ptr.vmem [resolvable:$true] %s108
      %s110 = sshll.u32 %s2, 4
      %s111 = int_to_ptr.hbm [resolvable:$true] %s110
      %113 = dma.vmem_to_hbm [thread:$0]  %s109, 16, %s111, [#allocation4]
    $region21: #{dummy_model_forward.1} parent=1 // pred_fallthru
      _
    // Predicated region
    $region22: #{dummy_model_forward.1} parent=1 // pred_check
      _
    $region23: #{dummy_model_forward.1} parent=1 // pred_check_branch
      %115 = sbr.rel (0) target = $region25
    $region24: #{dummy_model_forward.1} parent=1 // pred_region
      %117 = dma.done [#allocation4], 16
    $region25: #{dummy_model_forward.1} parent=1 // pred_fallthru
      _
    %118 = vsyncpa [#allocation3], 1
    %119 = vsyncpa [#allocation6], 1
    %120 = vsyncpa [#allocation4], 1

</llo_original>
